<compile_context>
chip_gen: v7x
topology: tpu7x:2x2x1
jax: 0.10.0
libtpu: 0.0.40
codegen_flags: <defaults>
</compile_context>

<pallas_src>
import jax
import jax.numpy as jnp
from jax.experimental import pallas as pl
from jax.experimental.pallas import tpu as pltpu

_LANE = 128
_LANE_CANDIDATES = (4096, 2048, 1024, 512, 256, 128)
_MIN_SPLIT_BYTES = 2 * 1024 * 1024       # below this, splitting across TCs isn't worth it


def _cdiv(a: int, b: int) -> int:
    return -(-a // b)


def _round_up(a: int, b: int) -> int:
    return _cdiv(a, b) * b


def _identity_kernel(x_ref, o_ref):
    # Pure pass-through: load the current VMEM tile, store it to the output tile.
    o_ref[...] = x_ref[...]


def _sublane_packing(dtype) -> int:
    # 32-bit -> 8 rows/vreg, 16-bit (bf16) -> 16, 8-bit -> 32.
    return max(8, 32 // max(1, jnp.dtype(dtype).itemsize))


def _vmem_budget():
    """Generation-aware (block_target_bytes, vmem_limit_bytes).

    In+out double-buffering gives a pipelined footprint of ~4*block, so the
    block target is capped at cap/8 (v7x: 8 MiB, v5e/v6e: capped at 12 MiB),
    and the scoped VMEM limit leaves headroom above that footprint while
    staying well under physical VMEM.
    """
    cap = 64 * 1024 * 1024                       # conservative default (v7x physical VMEM)
    try:
        cap = int(pltpu.get_tpu_info().vmem_capacity_bytes)
    except Exception:
        pass
    block_target = min(12 << 20, cap // 8)
    vmem_limit = max(32 << 20, min(cap * 3 // 4, 6 * block_target))
    return block_target, vmem_limit


def _lane_dense_view(n_elems: int, sub: int):
    """(rows, cols) flattened view with cols a large multiple of 128."""
    divs = [c for c in _LANE_CANDIDATES if n_elems % c == 0]
    if not divs:
        return None
    for c in divs:                               # largest lane width first
        if (n_elems // c) % sub == 0:
            return n_elems // c, c               # sublane-aligned rows: no edge masking
    c = divs[0]
    return n_elems // c, c                       # ragged rows handled by cdiv grid


def _pick_row_tile(rows, cols, itemsize, sub, block_target, total_bytes):
    """Row tile for a 1-D grid over `rows`, block shape (tr, cols)."""
    # Small tensors: one full-extent block (always legal, no edge mask, no
    # per-step pipeline overhead, not worth splitting across TensorCores).
    if total_bytes <= block_target and (total_bytes < _MIN_SPLIT_BYTES or rows < 2 * sub):
        return rows
    if rows < sub:
        return rows                              # can't tile sublanes; single (ragged) block
    max_tr = (rows // sub) * sub
    budget_rows = max(sub, (block_target // max(1, cols * itemsize)) // sub * sub)
    tr = min(max_tr, budget_rows)
    if total_bytes >= _MIN_SPLIT_BYTES and rows >= 2 * sub:
        # v7x megacore: guarantee >= 2 roughly-equal blocks on the parallel axis.
        half = min(max_tr, _round_up(_cdiv(rows, 2), sub))
        tr = min(tr, half)
        # Best-effort even block count so the two TensorCores stay balanced.
        n = _cdiv(rows, tr)
        if n > 1 and n % 2 == 1:
            tr2 = max(sub, min(max_tr, _round_up(_cdiv(rows, n + 1), sub)))
            if _cdiv(rows, tr2) % 2 == 0:
                tr = tr2
    return max(tr, 1)


def _copy_2d(x2: jax.Array, *, alias: bool) -> jax.Array:
    rows, cols = x2.shape
    itemsize = x2.dtype.itemsize
    sub = _sublane_packing(x2.dtype)
    nbytes = rows * cols * itemsize
    block_target, vmem_limit = _vmem_budget()
    tr = _pick_row_tile(rows, cols, itemsize, sub, block_target, nbytes)
    grid = (_cdiv(rows, tr),)

    return pl.pallas_call(
        _identity_kernel,
        out_shape=jax.ShapeDtypeStruct((rows, cols), x2.dtype),
        grid_spec=pltpu.PrefetchScalarGridSpec(
            num_scalar_prefetch=0,
            grid=grid,
            in_specs=[pl.BlockSpec((tr, cols), lambda i: (i, 0))],
            out_specs=pl.BlockSpec((tr, cols), lambda i: (i, 0)),
        ),
        # Alias only when the caller actually donates x; aliasing on the
        # non-donated path forces XLA to insert a defensive copy (~2x traffic).
        input_output_aliases=({0: 0} if alias else {}),
        compiler_params=pltpu.CompilerParams(
            dimension_semantics=("parallel",),
            vmem_limit_bytes=vmem_limit,
        ),
        cost_estimate=pl.CostEstimate(
            flops=0, transcendentals=0, bytes_accessed=2 * nbytes),
    )(x2)


def identity_pallas(x: jax.Array) -> jax.Array:
    """Identity forward pass.

    `Identity.forward` requires zero bytes of data movement, so the optimal
    implementation is to return `x` unchanged (no pallas_call at all).  Use
    `identity_copy_pallas` when a materialized copy in a fresh buffer is
    genuinely required.
    """
    return x


def identity_copy_pallas(x: jax.Array, *, donate: bool = False) -> jax.Array:
    """Materialized identity (bit-exact copy of x) as a Pallas TPU kernel.

    Set `donate=True` only when the caller donates `x`'s buffer (e.g. jit with
    donate_argnums); then the output aliases the input and no extra HBM is
    allocated.  Without donation, aliasing would add a hidden defensive copy,
    so it is disabled by default.
    """
    if x.ndim == 0 or x.size == 0:
        return x  # nothing to tile; pure pass-through

    orig_shape = x.shape
    sub = _sublane_packing(x.dtype)

    dense = _lane_dense_view(x.size, sub)
    if dense is not None:
        return _copy_2d(x.reshape(dense), alias=donate).reshape(orig_shape)

    # Element count not a multiple of 128: flatten and pad to a lane-dense slab
    # so the kernel's stores stay full-width vst (no vst.msk), then slice back.
    flat = x.reshape(-1)
    cols = 4 * _LANE
    padded = _round_up(flat.size, cols)
    xp = jnp.pad(flat, (0, padded - flat.size))
    y2 = _copy_2d(xp.reshape(-1, cols), alias=False)   # padded shape differs: never alias
    return y2.reshape(-1)[: flat.size].reshape(orig_shape)


if __name__ == "__main__":
    key = jax.random.PRNGKey(0)

    # Small NCHW-style feature map consistent with the lipreading module.
    x = jax.random.normal(key, (2, 4, 16, 16), dtype=jnp.float32)
    x_host = jax.device_get(x)                   # host copy (comparison baseline)

    # True Identity forward: zero data movement.
    y0 = identity_pallas(x)
    assert y0 is x

    # Materialized Pallas copy (small tensor -> single full-extent block).
    y = jax.block_until_ready(identity_copy_pallas(x))
    assert y.shape == x.shape and y.dtype == x.dtype
    assert bool(jnp.array_equal(y, jnp.asarray(x_host)))

    # Multi-block lane-dense path (>= 2 parallel blocks so both v7x TCs get work).
    xb = jax.random.normal(jax.random.PRNGKey(0), (4, 8, 256, 256), dtype=jnp.float32)
    yb = jax.block_until_ready(identity_copy_pallas(xb))
    assert yb.shape == xb.shape and yb.dtype == xb.dtype
    assert bool(jnp.array_equal(yb, xb))

    # Awkward element count -> padded lane-dense path (no masked narrow stores).
    xc = jax.random.normal(jax.random.PRNGKey(0), (3, 5, 7), dtype=jnp.float32)
    yc = jax.block_until_ready(identity_copy_pallas(xc))
    assert yc.shape == xc.shape and bool(jnp.array_equal(yc, xc))

    print("KERNEL_OK")
</pallas_src>

<mosaic_0001>
module attributes {stable_mosaic.version = 11 : i64} {
  func.func @_identity_kernel(%arg0: i32, %arg1: memref<8x256xf32, #tpu.memory_space<vmem>>, %arg2: memref<8x256xf32, #tpu.memory_space<vmem>>) attributes {dimension_semantics = [#tpu.dimension_semantics<parallel>], iteration_bounds = array<i64: 1>, scalar_prefetch = 0 : i64, scratch_operands = 0 : i64, tpu.core_type = #tpu.core_type<tc>, window_params = [{transform_indices = @transform_0, window_bounds = array<i64: 8, 256>}, {transform_indices = @transform_1, window_bounds = array<i64: 8, 256>}]} {
    %c0 = arith.constant 0 : index
    %c0_0 = arith.constant 0 : index
    %0 = vector.load %arg1[%c0, %c0_0] : memref<8x256xf32, #tpu.memory_space<vmem>>, vector<8x256xf32>
    %c0_1 = arith.constant 0 : index
    %c0_2 = arith.constant 0 : index
    %1 = vector.load %arg2[%c0_1, %c0_2] : memref<8x256xf32, #tpu.memory_space<vmem>>, vector<8x256xf32>
    tpu.vector_store %arg2[%c0_1, %c0_2], %0 {strides = array<i32>} : memref<8x256xf32, #tpu.memory_space<vmem>>, vector<8x256xf32>,
    return
  }
  func.func @transform_0(%arg0: i32) -> (i32, i32) {
    %c0_i32 = arith.constant 0 : i32
    %c0_i32_0 = arith.constant 0 : i32
    return %arg0, %c0_i32 : i32, i32
  }
  func.func @transform_1(%arg0: i32) -> (i32, i32) {
    %c0_i32 = arith.constant 0 : i32
    %c0_i32_0 = arith.constant 0 : i32
    return %arg0, %c0_i32 : i32, i32
  }
}

</mosaic_0001>

<llo_original>
// kernel: tpu_custom_call.1
$region0: #{tpu_custom_call.1}
  #allocation0 [shape = 'u32[]', space=smem, size = 0x4, offset = 0x4, fixed_abs, tag = 'smem constant byte address 0x4 - core index']
  #allocation1 [shape = 'u32[144,128]{1,0:T(1,128)}', space=vmem, size = 0x12000, scoped, tag = 'internal scratch']
  %s0 = inlined_call_operand.hbm [shape: f32[8,256], index: 0, kind: input, shape index: {}]
  %s1 = inlined_call_operand.hbm [shape: f32[8,256], index: 1, kind: output, shape index: {}]
  %s2 = sld [smem:[#allocation0]]
  $region18: #{tpu_custom_call.1} parent=0
    _
  %s4 = ssub.s32 1, %s2
  %s5 = scalar_select 0, %s4, %s2
  $region1: #{tpu_custom_call.1} parent=0
    #allocation2 [shape = 'u8[8192]{0}', space=vmem, size = 0x2000, scoped, tag = 'input window, operand 0, single buffered']
    #allocation3 [shape = 's32[1]{0}', space=sflag, size = 0x4, scoped, tag = 'scoped memory for tpu_custom_call.1']
    #allocation4 [shape = 's32[1]{0}', space=sflag, size = 0x4, scoped, tag = 'scoped memory for tpu_custom_call.1']
    #allocation5 [shape = 'u8[8192]{0}', space=vmem, size = 0x2000, scoped, tag = 'output window, operand 0, single buffered']
    %6 = vsyncpa [#allocation3], 0
    %7 = vsyncpa [#allocation4], 0
    // Predicated region
    $region2: #{tpu_custom_call.1} parent=1 // pred_check
      _
    $region3: #{tpu_custom_call.1} parent=1 // pred_check_branch
      %9 = sbr.rel (0) target = $region5
    $region4: #{tpu_custom_call.1} parent=1 // pred_region
      %s11 = ssub.s32 256, 256
      %12 = vsyncadd [#allocation3], %s11
      %s14 = sshll.u32 [#allocation2], 4
      %s15 = int_to_ptr.vmem [resolvable:$true] %s14
      %17 = dma.hbm_to_vmem [thread:$0]  %s0, 256, %s15, [#allocation3]
    $region5: #{tpu_custom_call.1} parent=1 // pred_fallthru
      _
    // Predicated region
    $region6: #{tpu_custom_call.1} parent=1 // pred_check
      _
    $region7: #{tpu_custom_call.1} parent=1 // pred_check_branch
      %19 = sbr.rel (0) target = $region9
    $region8: #{tpu_custom_call.1} parent=1 // pred_region
      %20 = dma.done [#allocation3], 256
    $region9: #{tpu_custom_call.1} parent=1 // pred_fallthru
      _
    %v21 = vld [vmem:[#allocation2] sm:$0xff]
    %v22 = vld [vmem:[#allocation2 + $0x8] sm:$0xff]
    %23 = vst [vmem:[#allocation5] sm:$0xff] %v21
    %24 = vst [vmem:[#allocation5 + $0x8] sm:$0xff] %v22
    // Predicated region
    $region10: #{tpu_custom_call.1} parent=1 // pred_check
      _
    $region11: #{tpu_custom_call.1} parent=1 // pred_check_branch
      %26 = sbr.rel (0) target = $region13
    $region12: #{tpu_custom_call.1} parent=1 // pred_region
      %s28 = ssub.s32 256, 256
      %29 = vsyncadd [#allocation4], %s28
      %s31 = sshll.u32 [#allocation5], 4
      %s32 = int_to_ptr.vmem [resolvable:$true] %s31
      %34 = dma.vmem_to_hbm [thread:$0]  %s32, 256, %s1, [#allocation4]
    $region13: #{tpu_custom_call.1} parent=1 // pred_fallthru
      _
    // Predicated region
    $region14: #{tpu_custom_call.1} parent=1 // pred_check
      _
    $region15: #{tpu_custom_call.1} parent=1 // pred_check_branch
      %36 = sbr.rel (0) target = $region17
    $region16: #{tpu_custom_call.1} parent=1 // pred_region
      %37 = dma.done [#allocation4], 256
    $region17: #{tpu_custom_call.1} parent=1 // pred_fallthru
      _
    %38 = vsyncpa [#allocation3], 1
    %39 = vsyncpa [#allocation4], 1

</llo_original>
